<compile_context>
chip_gen: v7x
topology: tpu7x:2x2x1
jax: 0.10.0
libtpu: 0.0.40
codegen_flags: <defaults>
</compile_context>

<pallas_src>
import functools
import math

import jax
import jax.numpy as jnp
from jax.experimental import pallas as pl
from jax.experimental.pallas import tpu as pltpu

LOG_2 = math.log(2.0)
HALF_LOG_2PI = 0.5 * math.log(2.0 * math.pi)
HIDDEN = 64  # true hidden width of the reference module


def _round_up(x, m):
    return ((x + m - 1) // m) * m


def agent_net_kernel(x_ref, eps_ref, w1_ref, b1_ref, w2_ref, b2_ref,
                     wh_ref, bh_ref, a_ref, logpi_ref,
                     *, n_act, valid_b, block_b, padded_b):
    f32 = jnp.float32
    bf16 = jnp.bfloat16

    # ---- trunk: Linear(n_obs,64)+Tanh, residual Linear(64,64)+Tanh (hidden padded to 128) ----
    xb = x_ref[...].astype(bf16)
    h1 = jnp.tanh(jnp.dot(xb, w1_ref[...], preferred_element_type=f32) + b1_ref[...])
    h2 = h1 + jnp.tanh(
        jnp.dot(h1.astype(bf16), w2_ref[...], preferred_element_type=f32) + b2_ref[...])

    # ---- fused heads: one matmul produces [mu | log_std | 0-pad] ----
    head = jnp.dot(h2.astype(bf16), wh_ref[...], preferred_element_type=f32) + bh_ref[...]
    mu = head[:, :n_act]
    log_std = head[:, n_act:2 * n_act]   # NOTE: reference applies no clamp -> none here
    std = jnp.exp(log_std)

    # ---- rsample + tanh squash, shared exp(-2|u|) tail ----
    eps = eps_ref[...]
    u = mu + std * eps
    t = jnp.exp(-2.0 * jnp.abs(u))                    # in (0, 1]
    inv = pl.reciprocal(1.0 + t, approx=True)         # EUP reciprocal (near-free slot)
    tanh_abs = (1.0 - t) * inv
    a = jnp.where(u >= 0.0, tanh_abs, -tanh_abs)      # tanh(u)

    # lane-dense store of the action block (pad to full 128-lane width)
    pad_lanes = a_ref.shape[-1] - n_act
    if pad_lanes:
        a_full = jnp.concatenate([a, jnp.zeros((block_b, pad_lanes), f32)], axis=-1)
    else:
        a_full = a
    a_ref[...] = a_full.astype(a_ref.dtype)

    # ---- log pi ----
    # Normal(mu, std).log_prob(u) with u = mu + std*eps  =>  -0.5*eps^2 - log_std - 0.5*log(2*pi)
    log_prob = -0.5 * eps * eps - log_std - HALF_LOG_2PI
    # softplus(-2u) = relu(-2u) + log1p(exp(-2|u|))   (stable; reuses t)
    softplus_m2u = jnp.maximum(-2.0 * u, 0.0) + jnp.log1p(t)
    correction = 2.0 * (LOG_2 - u - softplus_m2u)
    contrib = log_prob - correction
    if padded_b != valid_b:  # mask zero-padded batch rows (only traced when padding exists)
        row = (pl.program_id(0) * block_b
               + jax.lax.broadcasted_iota(jnp.int32, (block_b, n_act), 0))
        contrib = jnp.where(row < valid_b, contrib, 0.0)
    # per-tile partial sum over ALL elements (matches reference `.sum()`); scalar -> SMEM
    logpi_ref[0, 0] = jnp.sum(contrib)


def agent_net_forward(x, eps, packed, n_act, *, block_b=1024):
    """x: [B, n_obs] f32, eps: [B, n_act] f32 (N(0,1) rsample noise).
    Returns (a: [B, n_act] f32, log_pi_a: scalar f32)."""
    B, n_obs = x.shape
    hp = packed["w1"].shape[1]        # padded hidden width (128)
    headp = packed["wh"].shape[1]     # padded fused-head width (>= 2*n_act)
    a_pad = _round_up(max(n_act, 1), 128)

    tb = min(block_b, _round_up(B, 8))        # batch tile (multiple of 8 sublanes)
    bp = _round_up(B, tb)
    if bp != B:
        x = jnp.pad(x, ((0, bp - B), (0, 0)))
        eps = jnp.pad(eps, ((0, bp - B), (0, 0)))
    num_tiles = bp // tb

    kernel = functools.partial(agent_net_kernel, n_act=n_act, valid_b=B,
                               block_b=tb, padded_b=bp)

    grid_spec = pltpu.PrefetchScalarGridSpec(
        num_scalar_prefetch=0,
        grid=(num_tiles,),
        in_specs=[
            pl.BlockSpec((tb, n_obs), lambda i: (i, 0)),     # x rows
            pl.BlockSpec((tb, n_act), lambda i: (i, 0)),     # eps rows
            pl.BlockSpec((n_obs, hp), lambda i: (0, 0)),     # w1 (resident across tiles)
            pl.BlockSpec((1, hp), lambda i: (0, 0)),         # b1
            pl.BlockSpec((hp, hp), lambda i: (0, 0)),        # w2
            pl.BlockSpec((1, hp), lambda i: (0, 0)),         # b2
            pl.BlockSpec((hp, headp), lambda i: (0, 0)),     # fused [wmu|wls]
            pl.BlockSpec((1, headp), lambda i: (0, 0)),      # fused [bmu|bls]
        ],
        out_specs=(
            pl.BlockSpec((tb, a_pad), lambda i: (i, 0)),     # lane-dense action slab
            pl.BlockSpec((1, 1), lambda i: (i, 0),
                         memory_space=pltpu.MemorySpace.SMEM),  # per-tile log_pi partial
        ),
    )

    a_padded, logpi_parts = pl.pallas_call(
        kernel,
        grid_spec=grid_spec,
        out_shape=(jax.ShapeDtypeStruct((bp, a_pad), jnp.float32),
                   jax.ShapeDtypeStruct((num_tiles, 1), jnp.float32)),
        compiler_params=pltpu.CompilerParams(
            dimension_semantics=("parallel",),       # v7x / megacore: shard batch tiles
            vmem_limit_bytes=32 * 1024 * 1024),      # safe on v5e / v6e / v7x (64 MiB phys)
    )(x, eps, packed["w1"], packed["b1"], packed["w2"], packed["b2"],
      packed["wh"], packed["bh"])

    a = a_padded[:B, :n_act]
    log_pi_a = jnp.sum(logpi_parts)
    return a, log_pi_a


def init_params(key, n_obs, n_act):
    """Deterministic PyTorch nn.Linear-style init: U(-1/sqrt(fan_in), 1/sqrt(fan_in)).
    Weights stored pre-transposed as [in, out]; biases as [1, out]."""
    def linear(k, fan_in, fan_out):
        kw, kb = jax.random.split(k)
        bound = 1.0 / math.sqrt(fan_in)
        w = jax.random.uniform(kw, (fan_in, fan_out), jnp.float32, -bound, bound)
        b = jax.random.uniform(kb, (1, fan_out), jnp.float32, -bound, bound)
        return w, b

    k1, k2, k3, k4 = jax.random.split(key, 4)
    w1, b1 = linear(k1, n_obs, HIDDEN)
    w2, b2 = linear(k2, HIDDEN, HIDDEN)
    wmu, bmu = linear(k3, HIDDEN, n_act)
    wls, bls = linear(k4, HIDDEN, n_act)
    return dict(w1=w1, b1=b1, w2=w2, b2=b2, wmu=wmu, bmu=bmu, wls=wls, bls=bls)


def pack_params(p, n_obs, n_act):
    """Fuse mu/log_std heads, zero-pad hidden 64->128 (exact), cast matmul weights to bf16."""
    hp = _round_up(HIDDEN, 128)
    headp = _round_up(2 * n_act, 128)

    def pad2(a, rows, cols):
        return jnp.pad(a, ((0, rows - a.shape[0]), (0, cols - a.shape[1])))

    wh = jnp.concatenate([p["wmu"], p["wls"]], axis=1)   # [HIDDEN, 2*n_act]
    bh = jnp.concatenate([p["bmu"], p["bls"]], axis=1)   # [1, 2*n_act]
    return dict(
        w1=pad2(p["w1"], n_obs, hp).astype(jnp.bfloat16),
        b1=pad2(p["b1"], 1, hp),
        w2=pad2(p["w2"], hp, hp).astype(jnp.bfloat16),
        b2=pad2(p["b2"], 1, hp),
        wh=pad2(wh, hp, headp).astype(jnp.bfloat16),
        bh=pad2(bh, 1, headp),
    )


def agent_net_reference(x, eps, p):
    """Pure-JAX f32 reference (same math as the PyTorch module, eps supplied)."""
    h1 = jnp.tanh(x @ p["w1"] + p["b1"])
    h2 = h1 + jnp.tanh(h1 @ p["w2"] + p["b2"])
    mu = h2 @ p["wmu"] + p["bmu"]
    log_std = h2 @ p["wls"] + p["bls"]
    std = jnp.exp(log_std)
    u = mu + std * eps
    a = jnp.tanh(u)
    log_prob = -0.5 * eps * eps - log_std - HALF_LOG_2PI
    corr = 2.0 * (LOG_2 - u - jax.nn.softplus(-2.0 * u))
    return a, jnp.sum(log_prob - corr)


if __name__ == "__main__":
    B, n_obs, n_act = 8, 16, 8
    key = jax.random.PRNGKey(0)
    kx, keps, kp = jax.random.split(key, 3)

    x = jax.random.normal(kx, (B, n_obs), jnp.float32)
    eps = jax.random.normal(keps, (B, n_act), jnp.float32)   # rsample noise
    raw = init_params(kp, n_obs, n_act)
    packed = pack_params(raw, n_obs, n_act)

    a, log_pi_a = agent_net_forward(x, eps, packed, n_act)
    jax.block_until_ready((a, log_pi_a))

    assert a.shape == (B, n_act) and a.dtype == jnp.float32
    assert log_pi_a.shape == ()
    assert bool(jnp.all(jnp.isfinite(a))) and bool(jnp.isfinite(log_pi_a))

    # Loose sanity check vs pure-JAX f32 reference (bf16 MXU operands + approx
    # EUP reciprocal introduce small, bounded differences).
    a_ref, lp_ref = agent_net_reference(x, eps, raw)
    assert float(jnp.max(jnp.abs(a - a_ref))) < 0.2
    assert abs(float(log_pi_a) - float(lp_ref)) < 0.1 * abs(float(lp_ref)) + 5.0

    print("KERNEL_OK")
</pallas_src>

<mosaic_0001>
module attributes {stable_mosaic.version = 11 : i64} {
  func.func @agent_net_kernel(%arg0: i32, %arg1: memref<8x16xf32, #tpu.memory_space<vmem>>, %arg2: memref<8x8xf32, #tpu.memory_space<vmem>>, %arg3: memref<16x128xbf16, #tpu.memory_space<vmem>>, %arg4: memref<1x128xf32, #tpu.memory_space<vmem>>, %arg5: memref<128x128xbf16, #tpu.memory_space<vmem>>, %arg6: memref<1x128xf32, #tpu.memory_space<vmem>>, %arg7: memref<128x128xbf16, #tpu.memory_space<vmem>>, %arg8: memref<1x128xf32, #tpu.memory_space<vmem>>, %arg9: memref<8x128xf32, #tpu.memory_space<vmem>>, %arg10: memref<1x1xf32, #tpu.memory_space<smem>>) attributes {dimension_semantics = [#tpu.dimension_semantics<parallel>], iteration_bounds = array<i64: 1>, scalar_prefetch = 0 : i64, scratch_operands = 0 : i64, tpu.core_type = #tpu.core_type<tc>, window_params = [{transform_indices = @transform_0, window_bounds = array<i64: 8, 16>}, {transform_indices = @transform_1, window_bounds = array<i64: 8, 8>}, {pipeline_mode = #tpu.pipeline_mode<synchronous>, transform_indices = @transform_2, window_bounds = array<i64: 16, 128>}, {pipeline_mode = #tpu.pipeline_mode<synchronous>, transform_indices = @transform_3, window_bounds = array<i64: 1, 128>}, {pipeline_mode = #tpu.pipeline_mode<synchronous>, transform_indices = @transform_4, window_bounds = array<i64: 128, 128>}, {pipeline_mode = #tpu.pipeline_mode<synchronous>, transform_indices = @transform_5, window_bounds = array<i64: 1, 128>}, {pipeline_mode = #tpu.pipeline_mode<synchronous>, transform_indices = @transform_6, window_bounds = array<i64: 128, 128>}, {pipeline_mode = #tpu.pipeline_mode<synchronous>, transform_indices = @transform_7, window_bounds = array<i64: 1, 128>}, {transform_indices = @transform_8, window_bounds = array<i64: 8, 128>}, {transform_indices = @transform_9, window_bounds = array<i64: 1, 1>}]} {
    %c0 = arith.constant 0 : index
    %c0_0 = arith.constant 0 : index
    %0 = vector.load %arg1[%c0, %c0_0] : memref<8x16xf32, #tpu.memory_space<vmem>>, vector<8x16xf32>
    %1 = arith.truncf %0 : vector<8x16xf32> to vector<8x16xbf16>
    %c0_1 = arith.constant 0 : index
    %c0_2 = arith.constant 0 : index
    %2 = vector.load %arg3[%c0_1, %c0_2] : memref<16x128xbf16, #tpu.memory_space<vmem>>, vector<16x128xbf16>
    %cst = arith.constant dense<0.000000e+00> : vector<8x128xf32>
    %3 = tpu.matmul %1, %2, %cst {dimension_numbers = #tpu.dot_dimension_numbers<[1], [0], [0], [1], [0, 0, 1, 1], [], []>} : vector<8x16xbf16>, vector<16x128xbf16>, vector<8x128xf32> -> vector<8x128xf32>
    %c0_3 = arith.constant 0 : index
    %c0_4 = arith.constant 0 : index
    %4 = vector.load %arg4[%c0_3, %c0_4] : memref<1x128xf32, #tpu.memory_space<vmem>>, vector<1x128xf32>
    %5 = vector.broadcast %4 : vector<1x128xf32> to vector<8x128xf32>
    %6 = arith.addf %3, %5 : vector<8x128xf32>
    %7 = math.tanh %6 : vector<8x128xf32>
    %8 = arith.truncf %7 : vector<8x128xf32> to vector<8x128xbf16>
    %c0_5 = arith.constant 0 : index
    %c0_6 = arith.constant 0 : index
    %9 = vector.load %arg5[%c0_5, %c0_6] : memref<128x128xbf16, #tpu.memory_space<vmem>>, vector<128x128xbf16>
    %cst_7 = arith.constant dense<0.000000e+00> : vector<8x128xf32>
    %10 = tpu.matmul %8, %9, %cst_7 {dimension_numbers = #tpu.dot_dimension_numbers<[1], [0], [0], [1], [0, 0, 1, 1], [], []>} : vector<8x128xbf16>, vector<128x128xbf16>, vector<8x128xf32> -> vector<8x128xf32>
    %c0_8 = arith.constant 0 : index
    %c0_9 = arith.constant 0 : index
    %11 = vector.load %arg6[%c0_8, %c0_9] : memref<1x128xf32, #tpu.memory_space<vmem>>, vector<1x128xf32>
    %12 = vector.broadcast %11 : vector<1x128xf32> to vector<8x128xf32>
    %13 = arith.addf %10, %12 : vector<8x128xf32>
    %14 = math.tanh %13 : vector<8x128xf32>
    %15 = arith.addf %7, %14 : vector<8x128xf32>
    %16 = arith.truncf %15 : vector<8x128xf32> to vector<8x128xbf16>
    %c0_10 = arith.constant 0 : index
    %c0_11 = arith.constant 0 : index
    %17 = vector.load %arg7[%c0_10, %c0_11] : memref<128x128xbf16, #tpu.memory_space<vmem>>, vector<128x128xbf16>
    %cst_12 = arith.constant dense<0.000000e+00> : vector<8x128xf32>
    %18 = tpu.matmul %16, %17, %cst_12 {dimension_numbers = #tpu.dot_dimension_numbers<[1], [0], [0], [1], [0, 0, 1, 1], [], []>} : vector<8x128xbf16>, vector<128x128xbf16>, vector<8x128xf32> -> vector<8x128xf32>
    %c0_13 = arith.constant 0 : index
    %c0_14 = arith.constant 0 : index
    %19 = vector.load %arg8[%c0_13, %c0_14] : memref<1x128xf32, #tpu.memory_space<vmem>>, vector<1x128xf32>
    %20 = vector.broadcast %19 : vector<1x128xf32> to vector<8x128xf32>
    %21 = arith.addf %18, %20 : vector<8x128xf32>
    %22 = vector.extract_strided_slice %21 {offsets = [0, 0], sizes = [8, 8], strides = [1, 1]} : vector<8x128xf32> to vector<8x8xf32>
    %23 = vector.extract_strided_slice %21 {offsets = [0, 8], sizes = [8, 8], strides = [1, 1]} : vector<8x128xf32> to vector<8x8xf32>
    %24 = math.exp %23 : vector<8x8xf32>
    %c0_15 = arith.constant 0 : index
    %c0_16 = arith.constant 0 : index
    %25 = vector.load %arg2[%c0_15, %c0_16] : memref<8x8xf32, #tpu.memory_space<vmem>>, vector<8x8xf32>
    %26 = arith.mulf %24, %25 : vector<8x8xf32>
    %27 = arith.addf %22, %26 : vector<8x8xf32>
    %28 = math.absf %27 : vector<8x8xf32>
    %cst_17 = arith.constant -2.000000e+00 : f32
    %29 = vector.broadcast %cst_17 : f32 to vector<8x8xf32>
    %30 = arith.mulf %29, %28 : vector<8x8xf32>
    %31 = math.exp %30 : vector<8x8xf32>
    %cst_18 = arith.constant 1.000000e+00 : f32
    %32 = vector.broadcast %cst_18 : f32 to vector<8x8xf32>
    %33 = arith.addf %32, %31 : vector<8x8xf32>
    %34 = tpu.reciprocal %33 {approx = true} : vector<8x8xf32> -> vector<8x8xf32>
    %cst_19 = arith.constant 1.000000e+00 : f32
    %35 = vector.broadcast %cst_19 : f32 to vector<8x8xf32>
    %36 = arith.subf %35, %31 : vector<8x8xf32>
    %37 = arith.mulf %36, %34 : vector<8x8xf32>
    %cst_20 = arith.constant 0.000000e+00 : f32
    %38 = vector.broadcast %cst_20 : f32 to vector<8x8xf32>
    %39 = arith.cmpf oge, %27, %38 : vector<8x8xf32>
    %cst_21 = arith.constant 0.000000e+00 : f32
    %40 = vector.broadcast %cst_21 : f32 to vector<8x8xf32>
    %41 = arith.subf %40, %37 : vector<8x8xf32>
    %42 = arith.select %39, %37, %41 : vector<8x8xi1>, vector<8x8xf32>
    %cst_22 = arith.constant 0.000000e+00 : f32
    %43 = vector.broadcast %cst_22 : f32 to vector<8x120xf32>
    %44 = tpu.concatenate %42, %43 in 1 : vector<8x8xf32>, vector<8x120xf32> -> vector<8x128xf32>
    %c0_23 = arith.constant 0 : index
    %c0_24 = arith.constant 0 : index
    %45 = vector.load %arg9[%c0_23, %c0_24] : memref<8x128xf32, #tpu.memory_space<vmem>>, vector<8x128xf32>
    tpu.vector_store %arg9[%c0_23, %c0_24], %44 {strides = array<i32>} : memref<8x128xf32, #tpu.memory_space<vmem>>, vector<8x128xf32>,
    %cst_25 = arith.constant -5.000000e-01 : f32
    %46 = vector.broadcast %cst_25 : f32 to vector<8x8xf32>
    %47 = arith.mulf %46, %25 : vector<8x8xf32>
    %48 = arith.mulf %47, %25 : vector<8x8xf32>
    %49 = arith.subf %48, %23 : vector<8x8xf32>
    %cst_26 = arith.constant 0.918938517 : f32
    %50 = vector.broadcast %cst_26 : f32 to vector<8x8xf32>
    %51 = arith.subf %49, %50 : vector<8x8xf32>
    %cst_27 = arith.constant -2.000000e+00 : f32
    %52 = vector.broadcast %cst_27 : f32 to vector<8x8xf32>
    %53 = arith.mulf %52, %27 : vector<8x8xf32>
    %cst_28 = arith.constant 0.000000e+00 : f32
    %54 = vector.broadcast %cst_28 : f32 to vector<8x8xf32>
    %55 = arith.maximumf %53, %54 : vector<8x8xf32>
    %56 = math.log1p %31 : vector<8x8xf32>
    %57 = arith.addf %55, %56 : vector<8x8xf32>
    %cst_29 = arith.constant 0.693147182 : f32
    %58 = vector.broadcast %cst_29 : f32 to vector<8x8xf32>
    %59 = arith.subf %58, %27 : vector<8x8xf32>
    %60 = arith.subf %59, %57 : vector<8x8xf32>
    %cst_30 = arith.constant 2.000000e+00 : f32
    %61 = vector.broadcast %cst_30 : f32 to vector<8x8xf32>
    %62 = arith.mulf %61, %60 : vector<8x8xf32>
    %63 = arith.subf %51, %62 : vector<8x8xf32>
    %64 = vector.shape_cast %63 : vector<8x8xf32> to vector<1x8x8xf32>
    %cst_31 = arith.constant dense<0.000000e+00> : vector<1xf32>
    %65 = vector.multi_reduction <add>, %64, %cst_31 [1, 2] : vector<1x8x8xf32> to vector<1xf32>
    %66 = vector.shape_cast %65 : vector<1xf32> to vector<1x1x1xf32>
    %67 = vector.extract %66[0, 0, 0] : f32 from vector<1x1x1xf32>
    %c0_32 = arith.constant 0 : index
    %c0_33 = arith.constant 0 : index
    %68 = memref.load %arg10[%c0_32, %c0_33] : memref<1x1xf32, #tpu.memory_space<smem>>
    memref.store %67, %arg10[%c0_32, %c0_33] : memref<1x1xf32, #tpu.memory_space<smem>>
    return
  }
  func.func @transform_0(%arg0: i32) -> (i32, i32) {
    %c0_i32 = arith.constant 0 : i32
    %c0_i32_0 = arith.constant 0 : i32
    return %arg0, %c0_i32 : i32, i32
  }
  func.func @transform_1(%arg0: i32) -> (i32, i32) {
    %c0_i32 = arith.constant 0 : i32
    %c0_i32_0 = arith.constant 0 : i32
    return %arg0, %c0_i32 : i32, i32
  }
  func.func @transform_2(%arg0: i32) -> (i32, i32) {
    %c0_i32 = arith.constant 0 : i32
    %c0_i32_0 = arith.constant 0 : i32
    %c0_i32_1 = arith.constant 0 : i32
    return %c0_i32, %c0_i32_0 : i32, i32
  }
  func.func @transform_3(%arg0: i32) -> (i32, i32) {
    %c0_i32 = arith.constant 0 : i32
    %c0_i32_0 = arith.constant 0 : i32
    %c0_i32_1 = arith.constant 0 : i32
    return %c0_i32, %c0_i32_0 : i32, i32
  }
  func.func @transform_4(%arg0: i32) -> (i32, i32) {
    %c0_i32 = arith.constant 0 : i32
    %c0_i32_0 = arith.constant 0 : i32
    %c0_i32_1 = arith.constant 0 : i32
    return %c0_i32, %c0_i32_0 : i32, i32
  }
  func.func @transform_5(%arg0: i32) -> (i32, i32) {
    %c0_i32 = arith.constant 0 : i32
    %c0_i32_0 = arith.constant 0 : i32
    %c0_i32_1 = arith.constant 0 : i32
    return %c0_i32, %c0_i32_0 : i32, i32
  }
  func.func @transform_6(%arg0: i32) -> (i32, i32) {
    %c0_i32 = arith.constant 0 : i32
    %c0_i32_0 = arith.constant 0 : i32
    %c0_i32_1 = arith.constant 0 : i32
    return %c0_i32, %c0_i32_0 : i32, i32
  }
  func.func @transform_7(%arg0: i32) -> (i32, i32) {
    %c0_i32 = arith.constant 0 : i32
    %c0_i32_0 = arith.constant 0 : i32
    %c0_i32_1 = arith.constant 0 : i32
    return %c0_i32, %c0_i32_0 : i32, i32
  }
  func.func @transform_8(%arg0: i32) -> (i32, i32) {
    %c0_i32 = arith.constant 0 : i32
    %c0_i32_0 = arith.constant 0 : i32
    return %arg0, %c0_i32 : i32, i32
  }
  func.func @transform_9(%arg0: i32) -> (i32, i32) {
    %c0_i32 = arith.constant 0 : i32
    %c0_i32_0 = arith.constant 0 : i32
    return %arg0, %c0_i32 : i32, i32
  }
}

</mosaic_0001>

<llo_original>
// kernel: tpu_custom_call.1
$region0: #{tpu_custom_call.1}
  #allocation0 [shape = 'u32[]', space=smem, size = 0x4, offset = 0x4, fixed_abs, tag = 'smem constant byte address 0x4 - core index']
  #allocation1 [shape = 'u32[144,128]{1,0:T(1,128)}', space=vmem, size = 0x12000, scoped, tag = 'internal scratch']
  %s0 = inlined_call_operand.hbm [shape: f32[8,16], index: 0, kind: input, shape index: {}]
  %s1 = inlined_call_operand.hbm [shape: f32[8,8], index: 1, kind: input, shape index: {}]
  %s2 = inlined_call_operand.hbm [shape: bf16[16,128], index: 2, kind: input, shape index: {}]
  %s3 = inlined_call_operand.vmem [shape: f32[1,128], index: 3, kind: input, shape index: {}]
  %s4 = inlined_call_operand.hbm [shape: bf16[128,128], index: 4, kind: input, shape index: {}]
  %s5 = inlined_call_operand.vmem [shape: f32[1,128], index: 5, kind: input, shape index: {}]
  %s6 = inlined_call_operand.hbm [shape: bf16[128,128], index: 6, kind: input, shape index: {}]
  %s7 = inlined_call_operand.vmem [shape: f32[1,128], index: 7, kind: input, shape index: {}]
  %s8 = inlined_call_operand.hbm [shape: f32[8,128], index: 8, kind: output, shape index: {0}]
  %s9 = inlined_call_operand.hbm [shape: f32[1,1], index: 9, kind: output, shape index: {1}]
  %10 = xla_tuple %s8, %s9
  %s11 = sld [smem:[#allocation0]]
  $region70: #{tpu_custom_call.1} parent=0
    _
  %s13 = ssub.s32 1, %s11
  %s14 = scalar_select 0, %s13, %s11
  $region1: #{tpu_custom_call.1} parent=0
    #allocation2 [shape = 'u8[4096]{0}', space=vmem, size = 0x1000, scoped, tag = 'input window, operand 0, single buffered']
    #allocation3 [shape = 's32[1]{0}', space=sflag, size = 0x4, scoped, tag = 'scoped memory for tpu_custom_call.1']
    #allocation4 [shape = 's32[1]{0}', space=sflag, size = 0x4, scoped, tag = 'scoped memory for tpu_custom_call.1']
    #allocation5 [shape = 's32[1]{0}', space=sflag, size = 0x4, scoped, tag = 'scoped memory for tpu_custom_call.1']
    #allocation6 [shape = 'u8[4096]{0}', space=vmem, size = 0x1000, scoped, tag = 'input window, operand 1, single buffered']
    #allocation7 [shape = 's32[1]{0}', space=sflag, size = 0x4, scoped, tag = 'scoped memory for tpu_custom_call.1']
    #allocation8 [shape = 'u8[4096]{0}', space=vmem, size = 0x1000, scoped, tag = 'input window, operand 2, single buffered']
    #allocation9 [shape = 'u8[32768]{0}', space=vmem, size = 0x8000, scoped, tag = 'input window, operand 4, single buffered']
    #allocation10 [shape = 's32[1]{0}', space=sflag, size = 0x4, scoped, tag = 'scoped memory for tpu_custom_call.1']
    #allocation11 [shape = 'u8[32768]{0}', space=vmem, size = 0x8000, scoped, tag = 'input window, operand 6, single buffered']
    #allocation12 [shape = 'u8[4096]{0}', space=vmem, size = 0x1000, scoped, tag = 'output window, operand 0, single buffered']
    #allocation13 [shape = 'u8[512]{0}', space=smem, size = 0x200, scoped, tag = 'output window, operand 1, single buffered']
    %15 = vsyncpa [#allocation3], 0
    %16 = vsyncpa [#allocation7], 0
    %17 = vsyncpa [#allocation10], 0
    %18 = vsyncpa [#allocation4], 0
    %19 = vsyncpa [#allocation5], 0
    // Predicated region
    $region2: #{tpu_custom_call.1} parent=1 // pred_check
      _
    $region3: #{tpu_custom_call.1} parent=1 // pred_check_branch
      %21 = sbr.rel (0) target = $region5
    $region4: #{tpu_custom_call.1} parent=1 // pred_region
      %s23 = ssub.s32 128, 128
      %24 = vsyncadd [#allocation3], %s23
      %s26 = sshll.u32 [#allocation2], 4
      %s27 = int_to_ptr.vmem [resolvable:$true] %s26
      %29 = dma.hbm_to_vmem [thread:$0]  %s0, 128, %s27, [#allocation3]
    $region5: #{tpu_custom_call.1} parent=1 // pred_fallthru
      _
    // Predicated region
    $region6: #{tpu_custom_call.1} parent=1 // pred_check
      _
    $region7: #{tpu_custom_call.1} parent=1 // pred_check_branch
      %31 = sbr.rel (0) target = $region9
    $region8: #{tpu_custom_call.1} parent=1 // pred_region
      %s33 = ssub.s32 128, 128
      %34 = vsyncadd [#allocation7], %s33
      %s36 = sshll.u32 [#allocation6], 4
      %s37 = int_to_ptr.vmem [resolvable:$true] %s36
      %39 = dma.hbm_to_vmem [thread:$0]  %s1, 128, %s37, [#allocation7]
    $region9: #{tpu_custom_call.1} parent=1 // pred_fallthru
      _
    // Predicated region
    $region10: #{tpu_custom_call.1} parent=1 // pred_check
      _
    $region11: #{tpu_custom_call.1} parent=1 // pred_check_branch
      %41 = sbr.rel (0) target = $region13
    $region12: #{tpu_custom_call.1} parent=1 // pred_region
      %s43 = ssub.s32 128, 128
      %44 = vsyncadd [#allocation7], %s43
      %s45 = sshll.u32 [#allocation8], 4
      %s46 = int_to_ptr.vmem [resolvable:$true] %s45
      %51 = dma.hbm_to_vmem [thread:$0]  %s2, 128, %s46, [#allocation7], 64, 64, 4
    $region13: #{tpu_custom_call.1} parent=1 // pred_fallthru
      _
    // Predicated region
    $region14: #{tpu_custom_call.1} parent=1 // pred_check
      _
    $region15: #{tpu_custom_call.1} parent=1 // pred_check_branch
      %53 = sbr.rel (0) target = $region17
    $region16: #{tpu_custom_call.1} parent=1 // pred_region
      _
    $region17: #{tpu_custom_call.1} parent=1 // pred_fallthru
      _
    // Predicated region
    $region18: #{tpu_custom_call.1} parent=1 // pred_check
      _
    $region19: #{tpu_custom_call.1} parent=1 // pred_check_branch
      %55 = sbr.rel (0) target = $region21
    $region20: #{tpu_custom_call.1} parent=1 // pred_region
      %s57 = ssub.s32 1024, 1024
      %58 = vsyncadd [#allocation10], %s57
      %s59 = sshll.u32 [#allocation9], 4
      %s60 = int_to_ptr.vmem [resolvable:$true] %s59
      %65 = dma.hbm_to_vmem [thread:$0]  %s4, 1024, %s60, [#allocation10], 64, 64, 4
    $region21: #{tpu_custom_call.1} parent=1 // pred_fallthru
      _
    // Predicated region
    $region22: #{tpu_custom_call.1} parent=1 // pred_check
      _
    $region23: #{tpu_custom_call.1} parent=1 // pred_check_branch
      %67 = sbr.rel (0) target = $region25
    $region24: #{tpu_custom_call.1} parent=1 // pred_region
      _
    $region25: #{tpu_custom_call.1} parent=1 // pred_fallthru
      _
    // Predicated region
    $region26: #{tpu_custom_call.1} parent=1 // pred_check
      _
    $region27: #{tpu_custom_call.1} parent=1 // pred_check_branch
      %69 = sbr.rel (0) target = $region29
    $region28: #{tpu_custom_call.1} parent=1 // pred_region
      %s71 = ssub.s32 1024, 1024
      %72 = vsyncadd [#allocation10], %s71
      %s73 = sshll.u32 [#allocation11], 4
      %s74 = int_to_ptr.vmem [resolvable:$true] %s73
      %79 = dma.hbm_to_vmem [thread:$0]  %s6, 1024, %s74, [#allocation10], 64, 64, 4
    $region29: #{tpu_custom_call.1} parent=1 // pred_fallthru
      _
    // Predicated region
    $region30: #{tpu_custom_call.1} parent=1 // pred_check
      _
    $region31: #{tpu_custom_call.1} parent=1 // pred_check_branch
      %81 = sbr.rel (0) target = $region33
    $region32: #{tpu_custom_call.1} parent=1 // pred_region
      _
    $region33: #{tpu_custom_call.1} parent=1 // pred_fallthru
      _
    // Predicated region
    $region34: #{tpu_custom_call.1} parent=1 // pred_check
      _
    $region35: #{tpu_custom_call.1} parent=1 // pred_check_branch
      %83 = sbr.rel (0) target = $region37
    $region36: #{tpu_custom_call.1} parent=1 // pred_region
      %84 = dma.done [#allocation3], 128
    $region37: #{tpu_custom_call.1} parent=1 // pred_fallthru
      _
    // Predicated region
    $region38: #{tpu_custom_call.1} parent=1 // pred_check
      _
    $region39: #{tpu_custom_call.1} parent=1 // pred_check_branch
      %86 = sbr.rel (0) target = $region41
    $region40: #{tpu_custom_call.1} parent=1 // pred_region
      %87 = dma.done [#allocation7], 128
    $region41: #{tpu_custom_call.1} parent=1 // pred_fallthru
      _
    // Predicated region
    $region42: #{tpu_custom_call.1} parent=1 // pred_check
      _
    $region43: #{tpu_custom_call.1} parent=1 // pred_check_branch
      %89 = sbr.rel (0) target = $region45
    $region44: #{tpu_custom_call.1} parent=1 // pred_region
      %90 = dma.done [#allocation7], 128
    $region45: #{tpu_custom_call.1} parent=1 // pred_fallthru
      _
    // Predicated region
    $region46: #{tpu_custom_call.1} parent=1 // pred_check
      _
    $region47: #{tpu_custom_call.1} parent=1 // pred_check_branch
      %92 = sbr.rel (0) target = $region49
    $region48: #{tpu_custom_call.1} parent=1 // pred_region
      %93 = dma.done [#allocation10], 1024
    $region49: #{tpu_custom_call.1} parent=1 // pred_fallthru
      _
    // Predicated region
    $region50: #{tpu_custom_call.1} parent=1 // pred_check
      _
    $region51: #{tpu_custom_call.1} parent=1 // pred_check_branch
      %95 = sbr.rel (0) target = $region53
    $region52: #{tpu_custom_call.1} parent=1 // pred_region
      %96 = dma.done [#allocation10], 1024
    $region53: #{tpu_custom_call.1} parent=1 // pred_fallthru
      _
    %v98 = vld [vmem:[#allocation2] sm:$0xff]
    %v99 = vpack.c.bf16 %v98, %v98
    %v100 = vld [vmem:[#allocation8] sm:$0xf]
    %v101 = vld [vmem:[#allocation8 + $0x4] sm:$0xf]
    %v102 = vld [vmem:[%s3] sm:$0x1]
    %v104 = vlaneseq
    %v105 = vshrl.u32 %v104, 7
    %v106 = vsub.s32 0, %v105
    %v107 = vrot.slane %v102, %v106
    %v111 = vunpack.c.l.b16 %v100
    %v112 = vunpack.c.l.b16 %v101
    %v113 = vpack.c.b16 %v112, %v111
    %vm115 = vcmask 130048
    %v117 = vsel %vm115, %v99, 0
    %119 = vmatprep.subr.bf16.mxu0 0
    %120 = vmatpush1.bf16.msra.mxu0 %v113
    %121 = vmatprep.subr.bf16.mxu0 0
    %122 = vmatpush1.bf16.msra.mxu0 0
    %123 = vmatprep.subr.bf16.mxu0 0
    %124 = vmatpush1.bf16.msra.mxu0 0
    %125 = vmatprep.subr.bf16.mxu0 0
    %126 = vmatpush1.bf16.msra.mxu0 0
    %127 = vmatprep.subr.bf16.mxu0 0
    %128 = vmatpush1.bf16.msra.mxu0 0
    %129 = vmatprep.subr.bf16.mxu0 0
    %130 = vmatpush1.bf16.msra.mxu0 0
    %131 = vmatprep.subr.bf16.mxu0 0
    %132 = vmatpush1.bf16.msra.mxu0 0
    %133 = vmatprep.subr.bf16.mxu0 0
    %134 = vmatpush1.bf16.msra.mxu0 0
    %135 = vmatprep.subr.bf16.mxu0 0
    %136 = vmatpush1.bf16.msra.mxu0 0
    %137 = vmatprep.subr.bf16.mxu0 0
    %138 = vmatpush1.bf16.msra.mxu0 0
    %139 = vmatprep.subr.bf16.mxu0 0
    %140 = vmatpush1.bf16.msra.mxu0 0
    %141 = vmatprep.subr.bf16.mxu0 0
    %142 = vmatpush1.bf16.msra.mxu0 0
    %143 = vmatprep.subr.bf16.mxu0 0
    %144 = vmatpush1.bf16.msra.mxu0 0
    %145 = vmatprep.subr.bf16.mxu0 0
    %146 = vmatpush1.bf16.msra.mxu0 0
    %147 = vmatprep.subr.bf16.mxu0 0
    %148 = vmatpush1.bf16.msra.mxu0 0
    %149 = vmatprep.subr.bf16.mxu0 0
    %150 = vmatpush1.bf16.msra.mxu0 0
    %151 = vmatprep.mubr.bf16.mxu0 0
    %152 = vmatmul.mubr.bf16.gmra.mrb[0].mxu0 %v117
    %v153 = vpop.f32.mrb[0].mxu0
    %v154 = vadd.f32 %v107, %v153
    %v155 = vpop.f32.mrb[0].mxu0
    %v156 = vpop.f32.mrb[0].mxu0
    %v157 = vpop.f32.mrb[0].mxu0
    %158 = vdwg.mxu0
    %v159 = vtanh.pop %v154
    %v160 = vpack.c.bf16 %v159, %v159
    %v161 = vld [vmem:[#allocation9] sm:$0xf]
    %v162 = vld [vmem:[#allocation9 + $0x4] sm:$0xf]
    %v163 = vld [vmem:[#allocation9 + $0x8] sm:$0xf]
    %v164 = vld [vmem:[#allocation9 + $0xc] sm:$0xf]
    %v165 = vld [vmem:[#allocation9 + $0x10] sm:$0xf]
    %v166 = vld [vmem:[#allocation9 + $0x14] sm:$0xf]
    %v167 = vld [vmem:[#allocation9 + $0x18] sm:$0xf]
    %v168 = vld [vmem:[#allocation9 + $0x1c] sm:$0xf]
    %v169 = vld [vmem:[#allocation9 + $0x20] sm:$0xf]
    %v170 = vld [vmem:[#allocation9 + $0x24] sm:$0xf]
    %v171 = vld [vmem:[#allocation9 + $0x28] sm:$0xf]
    %v172 = vld [vmem:[#allocation9 + $0x2c] sm:$0xf]
    %v173 = vld [vmem:[#allocation9 + $0x30] sm:$0xf]
    %v174 = vld [vmem:[#allocation9 + $0x34] sm:$0xf]
    %v175 = vld [vmem:[#allocation9 + $0x38] sm:$0xf]
    %v176 = vld [vmem:[#allocation9 + $0x3c] sm:$0xf]
    %v177 = vld [vmem:[%s5] sm:$0x1]
    %v179 = vlaneseq
    %v180 = vshrl.u32 %v179, 7
    %v181 = vsub.s32 0, %v180
    %v182 = vrot.slane %v177, %v181
    %v200 = vunpack.c.l.b16 %v161
    %v201 = vunpack.c.l.b16 %v162
    %v202 = vunpack.c.l.b16 %v163
    %v203 = vunpack.c.l.b16 %v164
    %v204 = vunpack.c.l.b16 %v165
    %v205 = vunpack.c.l.b16 %v166
    %v206 = vunpack.c.l.b16 %v167
    %v207 = vunpack.c.l.b16 %v168
    %v208 = vunpack.c.l.b16 %v169
    %v209 = vunpack.c.l.b16 %v170
    %v210 = vunpack.c.l.b16 %v171
    %v211 = vunpack.c.l.b16 %v172
    %v212 = vunpack.c.l.b16 %v173
    %v213 = vunpack.c.l.b16 %v174
    %v214 = vunpack.c.l.b16 %v175
    %v215 = vunpack.c.l.b16 %v176
    %v216 = vpack.c.b16 %v201, %v200
    %v217 = vpack.c.b16 %v203, %v202
    %v218 = vpack.c.b16 %v205, %v204
    %v219 = vpack.c.b16 %v207, %v206
    %v220 = vpack.c.b16 %v209, %v208
    %v221 = vpack.c.b16 %v211, %v210
    %v222 = vpack.c.b16 %v213, %v212
    %v223 = vpack.c.b16 %v215, %v214
    %232 = vmatprep.subr.bf16.mxu0 0
    %233 = vmatpush1.bf16.msra.mxu0 %v216
    %234 = vmatprep.subr.bf16.mxu0 0
    %235 = vmatpush1.bf16.msra.mxu0 %v217
    %236 = vmatprep.subr.bf16.mxu0 0
    %237 = vmatpush1.bf16.msra.mxu0 %v218
    %238 = vmatprep.subr.bf16.mxu0 0
    %239 = vmatpush1.bf16.msra.mxu0 %v219
    %240 = vmatprep.subr.bf16.mxu0 0
    %241 = vmatpush1.bf16.msra.mxu0 %v220
    %242 = vmatprep.subr.bf16.mxu0 0
    %243 = vmatpush1.bf16.msra.mxu0 %v221
    %244 = vmatprep.subr.bf16.mxu0 0
    %245 = vmatpush1.bf16.msra.mxu0 %v222
    %246 = vmatprep.subr.bf16.mxu0 0
    %247 = vmatpush1.bf16.msra.mxu0 %v223
    %248 = vmatprep.subr.bf16.mxu0 0
    %249 = vmatpush1.bf16.msra.mxu0 0
    %250 = vmatprep.subr.bf16.mxu0 0
    %251 = vmatpush1.bf16.msra.mxu0 0
    %252 = vmatprep.subr.bf16.mxu0 0
    %253 = vmatpush1.bf16.msra.mxu0 0
    %254 = vmatprep.subr.bf16.mxu0 0
    %255 = vmatpush1.bf16.msra.mxu0 0
    %256 = vmatprep.subr.bf16.mxu0 0
    %257 = vmatpush1.bf16.msra.mxu0 0
    %258 = vmatprep.subr.bf16.mxu0 0
    %259 = vmatpush1.bf16.msra.mxu0 0
    %260 = vmatprep.subr.bf16.mxu0 0
    %261 = vmatpush1.bf16.msra.mxu0 0
    %262 = vmatprep.subr.bf16.mxu0 0
    %263 = vmatpush1.bf16.msra.mxu0 0
    %264 = vmatprep.mubr.bf16.mxu0 0
    %265 = vmatmul.mubr.bf16.gmra.mrb[0].mxu0 %v160
    %v266 = vpop.f32.mrb[0].mxu0
    %v267 = vadd.f32 %v182, %v266
    %v268 = vpop.f32.mrb[0].mxu0
    %v269 = vpop.f32.mrb[0].mxu0
    %v270 = vpop.f32.mrb[0].mxu0
    %271 = vdwg.mxu0
    %v272 = vtanh.pop %v267
    %v273 = vadd.f32 %v159, %v272
    %v274 = vpack.c.bf16 %v273, %v273
    %v275 = vld [vmem:[#allocation11] sm:$0xf]
    %v276 = vld [vmem:[#allocation11 + $0x4] sm:$0xf]
    %v277 = vld [vmem:[#allocation11 + $0x8] sm:$0xf]
    %v278 = vld [vmem:[#allocation11 + $0xc] sm:$0xf]
    %v279 = vld [vmem:[#allocation11 + $0x10] sm:$0xf]
    %v280 = vld [vmem:[#allocation11 + $0x14] sm:$0xf]
    %v281 = vld [vmem:[#allocation11 + $0x18] sm:$0xf]
    %v282 = vld [vmem:[#allocation11 + $0x1c] sm:$0xf]
    %v283 = vld [vmem:[#allocation11 + $0x20] sm:$0xf]
    %v284 = vld [vmem:[#allocation11 + $0x24] sm:$0xf]
    %v285 = vld [vmem:[#allocation11 + $0x28] sm:$0xf]
    %v286 = vld [vmem:[#allocation11 + $0x2c] sm:$0xf]
    %v287 = vld [vmem:[#allocation11 + $0x30] sm:$0xf]
    %v288 = vld [vmem:[#allocation11 + $0x34] sm:$0xf]
    %v289 = vld [vmem:[#allocation11 + $0x38] sm:$0xf]
    %v290 = vld [vmem:[#allocation11 + $0x3c] sm:$0xf]
    %v291 = vld [vmem:[%s7] sm:$0x1]
    %v293 = vlaneseq
    %v294 = vshrl.u32 %v293, 7
    %v295 = vsub.s32 0, %v294
    %v296 = vrot.slane %v291, %v295
    %v314 = vunpack.c.l.b16 %v275
    %v315 = vunpack.c.l.b16 %v276
    %v316 = vunpack.c.l.b16 %v277
    %v317 = vunpack.c.l.b16 %v278
    %v318 = vunpack.c.l.b16 %v279
    %v319 = vunpack.c.l.b16 %v280
    %v320 = vunpack.c.l.b16 %v281
    %v321 = vunpack.c.l.b16 %v282
    %v322 = vunpack.c.l.b16 %v283
    %v323 = vunpack.c.l.b16 %v284
    %v324 = vunpack.c.l.b16 %v285
    %v325 = vunpack.c.l.b16 %v286
    %v326 = vunpack.c.l.b16 %v287
    %v327 = vunpack.c.l.b16 %v288
    %v328 = vunpack.c.l.b16 %v289
    %v329 = vunpack.c.l.b16 %v290
    %v330 = vpack.c.b16 %v315, %v314
    %v331 = vpack.c.b16 %v317, %v316
    %v332 = vpack.c.b16 %v319, %v318
    %v333 = vpack.c.b16 %v321, %v320
    %v334 = vpack.c.b16 %v323, %v322
    %v335 = vpack.c.b16 %v325, %v324
    %v336 = vpack.c.b16 %v327, %v326
    %v337 = vpack.c.b16 %v329, %v328
    %346 = vmatprep.subr.bf16.mxu0 0
    %347 = vmatpush1.bf16.msra.mxu0 %v330
    %348 = vmatprep.subr.bf16.mxu0 0
    %349 = vmatpush1.bf16.msra.mxu0 %v331
    %350 = vmatprep.subr.bf16.mxu0 0
    %351 = vmatpush1.bf16.msra.mxu0 %v332
    %352 = vmatprep.subr.bf16.mxu0 0
    %353 = vmatpush1.bf16.msra.mxu0 %v333
    %354 = vmatprep.subr.bf16.mxu0 0
    %355 = vmatpush1.bf16.msra.mxu0 %v334
    %356 = vmatprep.subr.bf16.mxu0 0
    %357 = vmatpush1.bf16.msra.mxu0 %v335
    %358 = vmatprep.subr.bf16.mxu0 0
    %359 = vmatpush1.bf16.msra.mxu0 %v336
    %360 = vmatprep.subr.bf16.mxu0 0
    %361 = vmatpush1.bf16.msra.mxu0 %v337
    %362 = vmatprep.subr.bf16.mxu0 0
    %363 = vmatpush1.bf16.msra.mxu0 0
    %364 = vmatprep.subr.bf16.mxu0 0
    %365 = vmatpush1.bf16.msra.mxu0 0
    %366 = vmatprep.subr.bf16.mxu0 0
    %367 = vmatpush1.bf16.msra.mxu0 0
    %368 = vmatprep.subr.bf16.mxu0 0
    %369 = vmatpush1.bf16.msra.mxu0 0
    %370 = vmatprep.subr.bf16.mxu0 0
    %371 = vmatpush1.bf16.msra.mxu0 0
    %372 = vmatprep.subr.bf16.mxu0 0
    %373 = vmatpush1.bf16.msra.mxu0 0
    %374 = vmatprep.subr.bf16.mxu0 0
    %375 = vmatpush1.bf16.msra.mxu0 0
    %376 = vmatprep.subr.bf16.mxu0 0
    %377 = vmatpush1.bf16.msra.mxu0 0
    %378 = vmatprep.mubr.bf16.mxu0 0
    %379 = vmatmul.mubr.bf16.gmra.mrb[0].mxu0 %v274
    %v380 = vpop.f32.mrb[0].mxu0
    %v381 = vadd.f32 %v296, %v380
    %v382 = vpop.f32.mrb[0].mxu0
    %v383 = vpop.f32.mrb[0].mxu0
    %v384 = vpop.f32.mrb[0].mxu0
    %385 = vdwg.mxu0
    %v386 = vmul.f32 %v381, 1.442695
    %v387 = vpow.pop %v386
    %v388 = vld [vmem:[#allocation6] sm:$0xff]
    %390 = vrot.lane.b32.xlu0 %v388, 8
    %v391 = vpop.permute.xlu0 %390
    %v393 = vmul.f32 %v387, %v391
    %395 = vrot.lane.b32.xlu0 %v393, 120
    %v396 = vpop.permute.xlu0 %395
    %v398 = vadd.f32 %v381, %v396
    %v399 = vand.u32 2147483647, %v398
    %v400 = vmul.f32 %v399, -2.0
    %v401 = vmul.f32 %v400, 1.442695
    %v402 = vpow.pop %v401
    %v403 = vadd.f32 %v402, 1.0
    %v404 = vrcp.pop %v403
    %v405 = vsub.f32 1.0, %v402
    %v406 = vmul.f32 %v405, %v404
    %vm407 = vcmp.ge.f32.partialorder %v398, 0.0
    %v408 = vsub.f32 0.0, %v406
    %v409 = vsel %vm407, %v406, %v408
    %vm410 = vcmask 64512
    %v411 = vsel %vm410, %v409, 0.0
    %412 = vst [vmem:[#allocation12] sm:$0xff] %v411
    %v413 = vmul.f32 %v388, -0.5
    %v414 = vmul.f32 %v413, %v388
    %416 = vrot.lane.b32.xlu0 %v381, 120
    %v417 = vpop.permute.xlu0 %416
    %v419 = vsub.f32 %v414, %v417
    %v420 = vsub.f32 %v419, 0.9189385
    %v421 = vmul.f32 %v398, -2.0
    %v422 = vmax.f32 %v421, 0.0
    %v423 = vadd.f32 %v402, 1.0
    %v424 = vlog2.pop %v423
    %v425 = vmul.f32 %v424, 0.6931472
    %v426 = vmul.f32 -0.5, %v402
    %v427 = vadd.f32 %v426, 1.0
    %v428 = vmul.f32 %v427, %v402
    %v429 = vand.u32 2147483647, %v402
    %vm430 = vcmp.lt.f32.partialorder %v429, 0.0004427343
    %v431 = vsel %vm430, %v428, %v425
    %v432 = vadd.f32 %v422, %v431
    %v433 = vsub.f32 0.6931472, %v398
    %v434 = vsub.f32 %v433, %v432
    %v435 = vmul.f32 %v434, 2.0
    %v436 = vsub.f32 %v420, %v435
    %v437 = vsel %vm410, %v436, 0.0
    %438 = vadd.xlane.f32.xlu0 %v437
    %v439 = vpop.xlane.xlu0 %438
    %v440 = vrot.slane %v439, 4
    %v441 = vadd.f32 %v439, %v440
    %v442 = vrot.slane %v441, 2
    %v443 = vadd.f32 %v441, %v442
    %v444 = vrot.slane %v443, 1
    %v445 = vadd.f32 %v443, %v444
    %s446 = vtos %v445
    %s447 = scalar_lea.smem [#allocation13], 0
    %448 = sst [smem:[%s447]] %s446
    // Predicated region
    $region54: #{tpu_custom_call.1} parent=1 // pred_check
      _
    $region55: #{tpu_custom_call.1} parent=1 // pred_check_branch
      %450 = sbr.rel (0) target = $region57
    $region56: #{tpu_custom_call.1} parent=1 // pred_region
      %s452 = ssub.s32 128, 128
      %453 = vsyncadd [#allocation4], %s452
      %s455 = sshll.u32 [#allocation12], 4
      %s456 = int_to_ptr.vmem [resolvable:$true] %s455
      %458 = dma.vmem_to_hbm [thread:$0]  %s456, 128, %s8, [#allocation4]
    $region57: #{tpu_custom_call.1} parent=1 // pred_fallthru
      _
    // Predicated region
    $region58: #{tpu_custom_call.1} parent=1 // pred_check
      _
    $region59: #{tpu_custom_call.1} parent=1 // pred_check_branch
      %460 = sbr.rel (0) target = $region61
    $region60: #{tpu_custom_call.1} parent=1 // pred_region
      %s462 = ssub.s32 16, 16
      %463 = vsyncadd [#allocation5], %s462
      %466 = dma.smem_to_hbm [#allocation13], 16, %s9, [#allocation5]
    $region61: #{tpu_custom_call.1} parent=1 // pred_fallthru
      _
    // Predicated region
    $region62: #{tpu_custom_call.1} parent=1 // pred_check
      _
    $region63: #{tpu_custom_call.1} parent=1 // pred_check_branch
      %468 = sbr.rel (0) target = $region65
    $region64: #{tpu_custom_call.1} parent=1 // pred_region
      %469 = dma.done [#allocation4], 128
    $region65: #{tpu_custom_call.1} parent=1 // pred_fallthru
      _
    // Predicated region
    $region66: #{tpu_custom_call.1} parent=1 // pred_check
      _
    $region67: #{tpu_custom_call.1} parent=1 // pred_check_branch
      %471 = sbr.rel (0) target = $region69
    $region68: #{tpu_custom_call.1} parent=1 // pred_region
      %472 = dma.done [#allocation5], 16
    $region69: #{tpu_custom_call.1} parent=1 // pred_fallthru
      _
    %473 = sfence
    %474 = vsyncpa [#allocation3], 1
    %475 = vsyncpa [#allocation7], 1
    %476 = vsyncpa [#allocation10], 1
    %477 = vsyncpa [#allocation4], 1
    %478 = vsyncpa [#allocation5], 1

</llo_original>
